<compile_context>
chip_gen: v5e
topology: v5e:2x2
jax: 0.10.0
libtpu: 0.0.40
codegen_flags: <defaults>
</compile_context>

<pallas_src>
import jax
import jax.numpy as jnp
from jax.experimental import pallas as pl
from jax.experimental.pallas import tpu as pltpu


def _wrapped_module(x):
    # The concrete parameter-free module wrapped by ParallelLayerWrapper
    # (deterministic choice: ReLU).  dtype-safe formulation (no weak-type
    # promotion for non-float inputs).
    return jnp.maximum(x, jnp.zeros((), x.dtype))


def _parallel_wrapper_kernel(x_ref, o_ref):
    # Elementwise application of the wrapped module on the current VMEM tile.
    o_ref[...] = _wrapped_module(x_ref[...])


def _sublane_multiple(dtype) -> int:
    # Native sublane packing: 8 rows for 32-bit, 16 for 16-bit, 32 for 8-bit.
    itemsize = jnp.dtype(dtype).itemsize
    return {4: 8, 2: 16, 1: 32}.get(itemsize, 8)


def parallel_layer_wrapper(x, *, lanes=1024, target_block_bytes=2 * 1024 * 1024):
    """Apply ParallelLayerWrapper(module) to x of arbitrary shape via Pallas."""
    orig_shape = x.shape
    dtype = x.dtype
    n = x.size

    x_flat = x.reshape(-1)            # free for a contiguous input

    rows = n // lanes                 # kernel handles rows*lanes elements
    tail = n - rows * lanes           # < lanes elements -> plain jnp remainder

    if rows == 0:
        # Less than one lane-row of data: a standalone HBM round-trip kernel
        # would be pure overhead; plain jnp is the right path here.
        return _wrapped_module(x)

    # dtype-aware tile height sized to ~target_block_bytes per buffer.
    sub = _sublane_multiple(dtype)
    itemsize = jnp.dtype(dtype).itemsize
    tile_rows = max(sub, (target_block_bytes // (lanes * itemsize)) // sub * sub)
    # If the slab is shorter than one tile, use its full (possibly ragged)
    # extent: the (8,128) rule is satisfied because the block equals the full
    # array dim.  Partial last blocks are read-padded / write-masked by Pallas,
    # which is safe for a pure elementwise op.
    block_rows = tile_rows if rows >= tile_rows else rows

    if tail == 0:
        x2d = x_flat.reshape(rows, lanes)
    else:
        x2d = x_flat[: rows * lanes].reshape(rows, lanes)

    out2d = pl.pallas_call(
        _parallel_wrapper_kernel,
        out_shape=jax.ShapeDtypeStruct((rows, lanes), dtype),
        grid=(pl.cdiv(rows, block_rows),),
        in_specs=[pl.BlockSpec((block_rows, lanes), lambda i: (i, 0))],
        out_specs=pl.BlockSpec((block_rows, lanes), lambda i: (i, 0)),
        compiler_params=pltpu.CompilerParams(
            dimension_semantics=("parallel",),
        ),
    )(x2d)

    if tail == 0:
        return out2d.reshape(orig_shape)

    # Lane remainder (< 1024 elements): plain jnp, then stitch back together.
    tail_out = _wrapped_module(x_flat[rows * lanes:])
    return jnp.concatenate([out2d.reshape(-1), tail_out]).reshape(orig_shape)


if __name__ == "__main__":
    key = jax.random.PRNGKey(0)
    k0, k1 = jax.random.split(key)

    # Small NCHW input consistent with how ParallelLayerWrapper sits inside
    # conv/MLP stacks (wrapping an elementwise activation).
    x = jax.random.normal(k0, (2, 4, 16, 16), dtype=jnp.float32)
    y = parallel_layer_wrapper(x)
    jax.block_until_ready(y)

    y_ref = _wrapped_module(x)
    assert y.shape == x.shape and y.dtype == x.dtype
    assert jnp.max(jnp.abs(y - y_ref)) == 0.0

    # Odd-sized input to exercise the lane-remainder path.
    x2 = jax.random.normal(k1, (4, 300, 3), dtype=jnp.float32)
    y2 = parallel_layer_wrapper(x2)
    jax.block_until_ready(y2)
    assert jnp.max(jnp.abs(y2 - _wrapped_module(x2))) == 0.0

    print("KERNEL_OK")
</pallas_src>

<mosaic_0001>
module attributes {stable_mosaic.version = 11 : i64} {
  func.func @_parallel_wrapper_kernel(%arg0: i32, %arg1: memref<2x1024xf32, #tpu.memory_space<vmem>>, %arg2: memref<2x1024xf32, #tpu.memory_space<vmem>>) attributes {dimension_semantics = [#tpu.dimension_semantics<parallel>], iteration_bounds = array<i64: 1>, scalar_prefetch = 0 : i64, scratch_operands = 0 : i64, tpu.core_type = #tpu.core_type<tc>, window_params = [{transform_indices = @transform_0, window_bounds = array<i64: 2, 1024>}, {transform_indices = @transform_1, window_bounds = array<i64: 2, 1024>}]} {
    %c0 = arith.constant 0 : index
    %c0_0 = arith.constant 0 : index
    %0 = vector.load %arg1[%c0, %c0_0] : memref<2x1024xf32, #tpu.memory_space<vmem>>, vector<2x1024xf32>
    %cst = arith.constant 0.000000e+00 : f32
    %1 = vector.broadcast %cst : f32 to vector<2x1024xf32>
    %2 = arith.maximumf %0, %1 : vector<2x1024xf32>
    %c0_1 = arith.constant 0 : index
    %c0_2 = arith.constant 0 : index
    %3 = vector.load %arg2[%c0_1, %c0_2] : memref<2x1024xf32, #tpu.memory_space<vmem>>, vector<2x1024xf32>
    tpu.vector_store %arg2[%c0_1, %c0_2], %2 {strides = array<i32>} : memref<2x1024xf32, #tpu.memory_space<vmem>>, vector<2x1024xf32>,
    return
  }
  func.func @transform_0(%arg0: i32) -> (i32, i32) {
    %c0_i32 = arith.constant 0 : i32
    %c0_i32_0 = arith.constant 0 : i32
    return %arg0, %c0_i32 : i32, i32
  }
  func.func @transform_1(%arg0: i32) -> (i32, i32) {
    %c0_i32 = arith.constant 0 : i32
    %c0_i32_0 = arith.constant 0 : i32
    return %arg0, %c0_i32 : i32, i32
  }
}

</mosaic_0001>

<llo_original>
// kernel: tpu_custom_call.1
$region0: #{tpu_custom_call.1}
  #allocation0 [shape = 'u32[]', space=smem, size = 0x4, offset = 0x4, fixed_abs, tag = 'smem constant byte address 0x4 - core index']
  #allocation1 [shape = 'u32[72,128]{1,0:T(1,128)}', space=vmem, size = 0x9000, scoped, tag = 'internal scratch']
  %s0 = inlined_call_operand.hbm [shape: f32[2,1024], index: 0, kind: input, shape index: {}]
  %s1 = inlined_call_operand.hbm [shape: f32[2,1024], index: 1, kind: output, shape index: {}]
  %s2 = sld [smem:[#allocation0]]
  $region18: #{tpu_custom_call.1} parent=0
    _
  %s4 = ssub.s32 1, %s2
  %s5 = scalar_select 0, %s4, %s2
  $region1: #{tpu_custom_call.1} parent=0
    #allocation2 [shape = 'u8[8192]{0}', space=vmem, size = 0x2000, scoped, tag = 'input window, operand 0, single buffered']
    #allocation3 [shape = 's32[1]{0}', space=sflag, size = 0x4, scoped, tag = 'scoped memory for tpu_custom_call.1']
    #allocation4 [shape = 's32[1]{0}', space=sflag, size = 0x4, scoped, tag = 'scoped memory for tpu_custom_call.1']
    #allocation5 [shape = 'u8[8192]{0}', space=vmem, size = 0x2000, scoped, tag = 'output window, operand 0, single buffered']
    %6 = vsyncpa [#allocation3], 0
    %7 = vsyncpa [#allocation4], 0
    // Predicated region
    $region2: #{tpu_custom_call.1} parent=1 // pred_check
      _
    $region3: #{tpu_custom_call.1} parent=1 // pred_check_branch
      %9 = sbr.rel (0) target = $region5
    $region4: #{tpu_custom_call.1} parent=1 // pred_region
      %11 = vsyncadd [#allocation3], 0
      %s13 = sshll.u32 %s0, 4
      %s14 = int_to_ptr.hbm [resolvable:$true] %s13
      %s15 = sshll.u32 [#allocation2], 4
      %s16 = int_to_ptr.vmem [resolvable:$true] %s15
      %18 = dma.hbm_to_vmem [thread:$0]  %s14, 256, %s16, [#allocation3]
    $region5: #{tpu_custom_call.1} parent=1 // pred_fallthru
      _
    // Predicated region
    $region6: #{tpu_custom_call.1} parent=1 // pred_check
      _
    $region7: #{tpu_custom_call.1} parent=1 // pred_check_branch
      %20 = sbr.rel (0) target = $region9
    $region8: #{tpu_custom_call.1} parent=1 // pred_region
      %22 = dma.done [#allocation3], 256
    $region9: #{tpu_custom_call.1} parent=1 // pred_fallthru
      _
    %v23 = vld [vmem:[#allocation2] sm:$0xff]
    %v24 = vld [vmem:[#allocation2 + $0x8] sm:$0xff]
    %v25 = vmax.f32 %v23, 0.0
    %v26 = vmax.f32 %v24, 0.0
    %27 = vst [vmem:[#allocation5] sm:$0xff] %v25
    %28 = vst [vmem:[#allocation5 + $0x8] sm:$0xff] %v26
    // Predicated region
    $region10: #{tpu_custom_call.1} parent=1 // pred_check
      _
    $region11: #{tpu_custom_call.1} parent=1 // pred_check_branch
      %30 = sbr.rel (0) target = $region13
    $region12: #{tpu_custom_call.1} parent=1 // pred_region
      %32 = vsyncadd [#allocation4], 0
      %s34 = sshll.u32 [#allocation5], 4
      %s35 = int_to_ptr.vmem [resolvable:$true] %s34
      %s36 = sshll.u32 %s1, 4
      %s37 = int_to_ptr.hbm [resolvable:$true] %s36
      %39 = dma.vmem_to_hbm [thread:$0]  %s35, 256, %s37, [#allocation4]
    $region13: #{tpu_custom_call.1} parent=1 // pred_fallthru
      _
    // Predicated region
    $region14: #{tpu_custom_call.1} parent=1 // pred_check
      _
    $region15: #{tpu_custom_call.1} parent=1 // pred_check_branch
      %41 = sbr.rel (0) target = $region17
    $region16: #{tpu_custom_call.1} parent=1 // pred_region
      %43 = dma.done [#allocation4], 256
    $region17: #{tpu_custom_call.1} parent=1 // pred_fallthru
      _
    %44 = vsyncpa [#allocation3], 1
    %45 = vsyncpa [#allocation4], 1

</llo_original>
